<compile_context>
chip_gen: v7x
topology: tpu7x:2x2x1
jax: 0.10.0
libtpu: 0.0.40
codegen_flags: <defaults>
</compile_context>

<pallas_src>
import functools

import jax
import jax.numpy as jnp
from jax.experimental import pallas as pl
from jax.experimental.pallas import tpu as pltpu


# ---------------------------------------------------------------------------
# Pallas kernel: one (batch_tile, hw_tile) block per grid step.
# ---------------------------------------------------------------------------
def _patch_embed_kernel(x_ref, gamma_ref, beta_ref, o_ref, *, use_norm, eps):
    # x_ref:     (bt, C, hwt)  channels-major tile (torch .flatten(2) layout)
    # gamma_ref: (1, C)        LayerNorm weight, float32 (ignored if use_norm=False)
    # beta_ref:  (1, C)        LayerNorm bias, float32
    # o_ref:     (bt, hwt, C)  tokens-major output tile
    y = jnp.swapaxes(x_ref[...], 1, 2)                 # (bt, hwt, C)  XLU transpose
    if use_norm:
        y = y.astype(jnp.float32)                      # f32 stats only when needed
        mean = jnp.mean(y, axis=-1, keepdims=True)
        var = jnp.mean(jnp.square(y - mean), axis=-1, keepdims=True)
        y = (y - mean) * jax.lax.rsqrt(var + eps)      # rsqrt -> EUP slot
        y = y * gamma_ref[...] + beta_ref[...]         # (1, C) broadcast, emitted once
    o_ref[...] = y.astype(o_ref.dtype)


# ---------------------------------------------------------------------------
# Per-generation VMEM capacity (v5e/v6e: 128 MiB, v7x: 64 MiB per TC).
# ---------------------------------------------------------------------------
def _vmem_capacity_bytes():
    try:
        return int(pltpu.get_tpu_info().vmem_capacity_bytes)
    except Exception:
        return 64 * 1024 * 1024        # conservative fallback (v7x per-TC floor)


# ---------------------------------------------------------------------------
# Tile sizing: largest (batch_tile, hw_tile) under the budget, where the budget
# accounts for the double-buffered I/O tiles AND the in-kernel transposed /
# normalized temporaries.  hw_tile is a 128-multiple divisor of HW (or full HW).
# Prefers >= 2 total grid steps so both v7x TensorCores get work.
# ---------------------------------------------------------------------------
def _pick_tiles(b, c, hw, itemsize, use_norm, budget_bytes):
    cands = {hw}                                   # full extent always legal
    t = 128
    while t <= hw // 2:
        if hw % t == 0:
            cands.add(t)
        t += 128
    cands = sorted(cands)

    def step_bytes(bt, hwt):
        io = 4 * bt * c * hwt * itemsize           # 2x dbl-buffered in + out tiles
        tmp = 2 * bt * hwt * c * (4 if use_norm else itemsize)   # in-kernel temps
        return io + tmp

    hwt = cands[0]                                 # smallest candidate as fallback
    for cand in cands:
        if step_bytes(1, cand) <= budget_bytes:
            hwt = cand
    bt = 1
    for cand in range(1, b + 1):
        if b % cand == 0 and step_bytes(cand, hwt) <= budget_bytes:
            bt = cand

    # Keep >= 2 grid steps (cheap here) so a v7x megacore has parallel work.
    if (b // bt) * (hw // hwt) < 2:
        if b // bt == 1 and b > 1:
            for cand in range(bt - 1, 0, -1):
                if b % cand == 0:
                    bt = cand
                    break
        elif hw // hwt == 1 and len(cands) > 1:
            hwt = cands[-2]
    return bt, hwt


# ---------------------------------------------------------------------------
# Wrapper
# ---------------------------------------------------------------------------
def patch_embed(x, gamma=None, beta=None, *, eps=1e-5, batch_tile=None,
                hw_tile=None, force_kernel=False):
    """x: (B, C, H, W).  Returns (B, H*W, C); applies LayerNorm iff gamma given."""
    b, c, h, w = x.shape
    hw = h * w
    x3 = x.reshape(b, c, hw)                       # torch .flatten(2): metadata-only

    use_norm = gamma is not None
    if not use_norm and not force_kernel:
        # Pure relayout already runs at HBM roofline in XLA; the kernel only
        # adds value when it fuses the LayerNorm.
        return jnp.transpose(x3, (0, 2, 1))

    # Keep LayerNorm parameters in float32 (no truncation for bf16 activations).
    if use_norm:
        gamma2 = jnp.asarray(gamma, jnp.float32).reshape(1, c)
        beta2 = jnp.asarray(beta, jnp.float32).reshape(1, c)
    else:
        gamma2 = jnp.ones((1, c), jnp.float32)     # never read by the kernel
        beta2 = jnp.zeros((1, c), jnp.float32)

    itemsize = x.dtype.itemsize
    capacity = _vmem_capacity_bytes()
    vmem_limit = min(capacity * 3 // 4, 96 * 1024 * 1024)
    budget = vmem_limit // 2                       # headroom for pipeline overhead

    bt, hwt = _pick_tiles(b, c, hw, itemsize, use_norm, budget)
    if batch_tile is not None:
        bt = batch_tile
    if hw_tile is not None:
        hwt = hw_tile
    assert b % bt == 0, "batch tile must divide batch"
    assert hw % hwt == 0, "HW tile must divide H*W"

    cost = pl.CostEstimate(
        flops=(8 * b * hw * c) if use_norm else 0,
        transcendentals=(b * hw) if use_norm else 0,
        bytes_accessed=2 * b * hw * c * itemsize + 2 * c * 4,
    )

    kernel = functools.partial(_patch_embed_kernel, use_norm=use_norm, eps=eps)
    return pl.pallas_call(
        kernel,
        out_shape=jax.ShapeDtypeStruct((b, hw, c), x.dtype),
        grid_spec=pltpu.PrefetchScalarGridSpec(
            num_scalar_prefetch=0,
            grid=(b // bt, hw // hwt),
            in_specs=[
                pl.BlockSpec((bt, c, hwt), lambda i, j: (i, 0, j)),
                pl.BlockSpec((1, c), lambda i, j: (0, 0)),   # VMEM-resident params
                pl.BlockSpec((1, c), lambda i, j: (0, 0)),
            ],
            out_specs=pl.BlockSpec((bt, hwt, c), lambda i, j: (i, j, 0)),
        ),
        compiler_params=pltpu.CompilerParams(
            dimension_semantics=("parallel", "parallel"),
            vmem_limit_bytes=vmem_limit,
        ),
        cost_estimate=cost,
    )(x3, gamma2, beta2)


# ---------------------------------------------------------------------------
# Pure-JAX reference (mirrors the PyTorch forward)
# ---------------------------------------------------------------------------
def reference(x, gamma=None, beta=None, eps=1e-5):
    b, c, h, w = x.shape
    y = jnp.transpose(x.reshape(b, c, h * w), (0, 2, 1))        # (B, HW, C)
    if gamma is not None:
        mean = jnp.mean(y, axis=-1, keepdims=True)
        var = jnp.mean(jnp.square(y - mean), axis=-1, keepdims=True)
        y = (y - mean) / jnp.sqrt(var + eps)
        y = y * gamma.reshape(1, 1, c) + beta.reshape(1, 1, c)
    return y


# ---------------------------------------------------------------------------
if __name__ == "__main__":
    B, C, H, W = 2, 96, 16, 16            # embed_dim=96 (module default), small HxW
    key = jax.random.PRNGKey(0)
    kx, kg, kb = jax.random.split(key, 3)
    x = jax.random.normal(kx, (B, C, H, W), jnp.float32)
    gamma = 1.0 + 0.02 * jax.random.normal(kg, (C,), jnp.float32)
    beta = 0.02 * jax.random.normal(kb, (C,), jnp.float32)

    # Path 1: norm_layer=None (class default) -> pure flatten(2).transpose(1, 2).
    # Wrapper bypasses Pallas (bare transpose is already at HBM roofline).
    out_plain = jax.block_until_ready(patch_embed(x))
    ref_plain = reference(x)
    assert out_plain.shape == (B, H * W, C)
    assert jnp.allclose(out_plain, ref_plain, atol=1e-6, rtol=1e-6), \
        "mismatch vs reference (no norm, bypass)"

    # Same path forced through the Pallas kernel (exercise the no-norm branch).
    out_plain_k = jax.block_until_ready(patch_embed(x, force_kernel=True))
    assert out_plain_k.shape == (B, H * W, C)
    assert jnp.allclose(out_plain_k, ref_plain, atol=1e-6, rtol=1e-6), \
        "mismatch vs reference (no norm, kernel)"

    # Path 2: norm_layer=nn.LayerNorm (SwinIR patch_norm=True usage).
    out_norm = jax.block_until_ready(patch_embed(x, gamma, beta))
    ref_norm = reference(x, gamma, beta)
    assert out_norm.shape == (B, H * W, C)
    assert jnp.allclose(out_norm, ref_norm, atol=1e-5, rtol=1e-5), \
        "mismatch vs reference (LayerNorm)"

    print("KERNEL_OK")
</pallas_src>

<mosaic_0001>
module attributes {stable_mosaic.version = 11 : i64} {
  func.func @_patch_embed_kernel(%arg0: i32, %arg1: i32, %arg2: memref<1x96x256xf32, #tpu.memory_space<vmem>>, %arg3: memref<1x96xf32, #tpu.memory_space<vmem>>, %arg4: memref<1x96xf32, #tpu.memory_space<vmem>>, %arg5: memref<1x256x96xf32, #tpu.memory_space<vmem>>) attributes {dimension_semantics = [#tpu.dimension_semantics<parallel>, #tpu.dimension_semantics<parallel>], iteration_bounds = array<i64: 2, 1>, scalar_prefetch = 0 : i64, scratch_operands = 0 : i64, tpu.core_type = #tpu.core_type<tc>, window_params = [{transform_indices = @transform_0, window_bounds = array<i64: 1, 96, 256>}, {pipeline_mode = #tpu.pipeline_mode<synchronous>, transform_indices = @transform_1, window_bounds = array<i64: 1, 96>}, {pipeline_mode = #tpu.pipeline_mode<synchronous>, transform_indices = @transform_2, window_bounds = array<i64: 1, 96>}, {transform_indices = @transform_3, window_bounds = array<i64: 1, 256, 96>}]} {
    %c0 = arith.constant 0 : index
    %c0_0 = arith.constant 0 : index
    %c0_1 = arith.constant 0 : index
    %0 = vector.load %arg2[%c0, %c0_0, %c0_1] : memref<1x96x256xf32, #tpu.memory_space<vmem>>, vector<1x96x256xf32>
    %1 = tpu.transpose %0, [0, 2, 1] : vector<1x96x256xf32> -> vector<1x256x96xf32>
    %c0_2 = arith.constant 0 : index
    %c0_3 = arith.constant 0 : index
    %c0_4 = arith.constant 0 : index
    %2 = vector.load %arg5[%c0_2, %c0_3, %c0_4] : memref<1x256x96xf32, #tpu.memory_space<vmem>>, vector<1x256x96xf32>
    tpu.vector_store %arg5[%c0_2, %c0_3, %c0_4], %1 {strides = array<i32>} : memref<1x256x96xf32, #tpu.memory_space<vmem>>, vector<1x256x96xf32>,
    return
  }
  func.func @transform_0(%arg0: i32, %arg1: i32) -> (i32, i32, i32) {
    %c0_i32 = arith.constant 0 : i32
    %c0_i32_0 = arith.constant 0 : i32
    return %arg0, %c0_i32, %arg1 : i32, i32, i32
  }
  func.func @transform_1(%arg0: i32, %arg1: i32) -> (i32, i32) {
    %c0_i32 = arith.constant 0 : i32
    %c0_i32_0 = arith.constant 0 : i32
    %c0_i32_1 = arith.constant 0 : i32
    return %c0_i32, %c0_i32_0 : i32, i32
  }
  func.func @transform_2(%arg0: i32, %arg1: i32) -> (i32, i32) {
    %c0_i32 = arith.constant 0 : i32
    %c0_i32_0 = arith.constant 0 : i32
    %c0_i32_1 = arith.constant 0 : i32
    return %c0_i32, %c0_i32_0 : i32, i32
  }
  func.func @transform_3(%arg0: i32, %arg1: i32) -> (i32, i32, i32) {
    %c0_i32 = arith.constant 0 : i32
    %c0_i32_0 = arith.constant 0 : i32
    return %arg0, %arg1, %c0_i32 : i32, i32, i32
  }
}

</mosaic_0001>

<llo_original>
// kernel: tpu_custom_call.1
$region0: #{tpu_custom_call.1}
  #allocation0 [shape = 'u32[]', space=smem, size = 0x4, offset = 0x4, fixed_abs, tag = 'smem constant byte address 0x4 - core index']
  #allocation1 [shape = 'u32[144,128]{1,0:T(1,128)}', space=vmem, size = 0x12000, scoped, tag = 'internal scratch']
  %s0 = inlined_call_operand.hbm [shape: f32[2,96,256], index: 0, kind: input, shape index: {}]
  %s1 = inlined_call_operand.vmem [shape: f32[1,96], index: 1, kind: input, shape index: {}]
  %s2 = inlined_call_operand.vmem [shape: f32[1,96], index: 2, kind: input, shape index: {}]
  %s3 = inlined_call_operand.vmem [shape: f32[2,256,96], index: 3, kind: output, shape index: {}]
  %s4 = sld [smem:[#allocation0]]
  $region49: #{tpu_custom_call.1} parent=0
    _
  %s6 = ssub.s32 1, %s4
  %s7 = scalar_select 0, %s6, %s4
  $region1: #{tpu_custom_call.1} parent=0
    #allocation2 [shape = 'u8[196608]{0}', space=vmem, size = 0x30000, scoped, tag = 'input window, operand 0']
    #allocation3 [shape = 's32[2]{0}', space=sflag, size = 0x8, scoped, tag = 'scoped memory for tpu_custom_call.1']
    %8 = vsyncpa [#allocation3], 0
    %s9 = scalar_lea.sflag [#allocation3], 1
    %10 = vsyncpa %s9, 0
    loop: start=0, step=1, limit=4
    $region2: #{tpu_custom_call.1} parent=1 // loop_pre_header
      _
    $region3: #{tpu_custom_call.1} parent=1 // loop_header
      %s12 = sphi 0, %s16
      %p13 = scmp.ge.s32.totalorder %s12, 4
      %s19 = sphi 0, %s31
      %s20 = sphi 0, %s27
      %s21 = sphi 0, %s19
      %s22 = sphi 0, %s20
      %s23 = sphi 0, %s21
      %s24 = sphi 0, %s22
      %s36 = sphi 0, %s38
      %s39 = sphi 0, %s36
      %s40 = sphi 0, %s39
      %s56 = sphi 0, %s40
      %s60 = sphi 0, %s60
      %s62 = sphi 0, %s60
      %s63 = sphi 0, %s62
      %s77 = sphi 0, %s63
      %s81 = sphi 0, %s81
      %s83 = sphi 0, %s81
      %s84 = sphi 0, %s83
      %s98 = sphi 0, %s84
      %s106 = sphi 0, %s108
      %s109 = sphi 0, %s106
      %s110 = sphi 0, %s109
      %s126 = sphi 0, %s110
    $region4: #{tpu_custom_call.1} parent=1 // loop_header_branch
      %15 = sbr.rel (%p13) target = $region8
    $region5: #{tpu_custom_call.1} parent=1 // loop_body
      %s17 = ssub.s32 %s12, 1
      %s18 = ssub.s32 %s12, 2
      %s25 = sadd.s32 1, %s20
      %p26 = scmp.ge.s32.totalorder %s25, 1
      %s27 = scalar_select %p26, 0, %s25
      %s28 = sadd.s32 1, %s19
      %s29 = scalar_select %p26, %s28, %s19
      %p30 = scmp.ge.s32.totalorder %s29, 2
      %s31 = scalar_select %p30, 0, %s29
      %s32 = ssub.s32 %s19, %s31
      %s33 = ssub.s32 %s20, %s27
      %s34 = sor.u32 %s32, %s33
      %p35 = scmp.eq.s32.totalorder %s34, 0
      %s37 = sadd.s32 %s36, 1
      %s38 = scalar_select %p35, %s36, %s37
      %p41 = pneg %p35
      %p42 = scmp.eq.s32.totalorder %s12, 1
      %p43 = por %p41, %p42
      %p44 = scmp.ne.s32.totalorder %s36, %s39
      %p45 = scmp.eq.s32.totalorder %s12, 0
      %p46 = por %p44, %p45
      %p47 = scmp.ne.s32.totalorder %s36, %s39
      %p48 = scmp.eq.s32.totalorder %s17, 1
      %p49 = por %p47, %p48
      %p50 = scmp.ne.s32.totalorder %s39, %s40
      %p51 = scmp.eq.s32.totalorder %s17, 0
      %p52 = por %p50, %p51
      %p53 = scmp.ne.s32.totalorder %s39, %s40
      %p54 = scmp.eq.s32.totalorder %s18, 1
      %p55 = por %p53, %p54
      %p57 = scmp.ne.s32.totalorder %s40, %s56
      %p58 = scmp.eq.s32.totalorder %s18, 0
      %p59 = por %p57, %p58
      %s61 = sadd.s32 %s60, 1
      %p64 = scmp.eq.s32.totalorder %s12, 1
      %p65 = scmp.ne.s32.totalorder %s60, %s62
      %p66 = scmp.eq.s32.totalorder %s12, 0
      %p67 = por %p65, %p66
      %p68 = scmp.ne.s32.totalorder %s60, %s62
      %p69 = scmp.eq.s32.totalorder %s17, 1
      %p70 = por %p68, %p69
      %p71 = scmp.ne.s32.totalorder %s62, %s63
      %p72 = scmp.eq.s32.totalorder %s17, 0
      %p73 = por %p71, %p72
      %p74 = scmp.ne.s32.totalorder %s62, %s63
      %p75 = scmp.eq.s32.totalorder %s18, 1
      %p76 = por %p74, %p75
      %p78 = scmp.ne.s32.totalorder %s63, %s77
      %p79 = scmp.eq.s32.totalorder %s18, 0
      %p80 = por %p78, %p79
      %s82 = sadd.s32 %s81, 1
      %p85 = scmp.eq.s32.totalorder %s12, 1
      %p86 = scmp.ne.s32.totalorder %s81, %s83
      %p87 = scmp.eq.s32.totalorder %s12, 0
      %p88 = por %p86, %p87
      %p89 = scmp.ne.s32.totalorder %s81, %s83
      %p90 = scmp.eq.s32.totalorder %s17, 1
      %p91 = por %p89, %p90
      %p92 = scmp.ne.s32.totalorder %s83, %s84
      %p93 = scmp.eq.s32.totalorder %s17, 0
      %p94 = por %p92, %p93
      %p95 = scmp.ne.s32.totalorder %s83, %s84
      %p96 = scmp.eq.s32.totalorder %s18, 1
      %p97 = por %p95, %p96
      %p99 = scmp.ne.s32.totalorder %s84, %s98
      %p100 = scmp.eq.s32.totalorder %s18, 0
      %p101 = por %p99, %p100
      %s102 = ssub.s32 %s19, %s31
      %s103 = ssub.s32 %s20, %s27
      %s104 = sor.u32 %s102, %s103
      %p105 = scmp.eq.s32.totalorder %s104, 0
      %s107 = sadd.s32 %s106, 1
      %s108 = scalar_select %p105, %s106, %s107
      %p111 = pneg %p105
      %p112 = scmp.eq.s32.totalorder %s12, 1
      %p113 = por %p111, %p112
      %p114 = scmp.ne.s32.totalorder %s106, %s109
      %p115 = scmp.eq.s32.totalorder %s12, 0
      %p116 = por %p114, %p115
      %p117 = scmp.ne.s32.totalorder %s106, %s109
      %p118 = scmp.eq.s32.totalorder %s17, 1
      %p119 = por %p117, %p118
      %p120 = scmp.ne.s32.totalorder %s109, %s110
      %p121 = scmp.eq.s32.totalorder %s17, 0
      %p122 = por %p120, %p121
      %p123 = scmp.ne.s32.totalorder %s109, %s110
      %p124 = scmp.eq.s32.totalorder %s18, 1
      %p125 = por %p123, %p124
      %p127 = scmp.ne.s32.totalorder %s110, %s126
      %p128 = scmp.eq.s32.totalorder %s18, 0
      %p129 = por %p127, %p128
      %p130 = scmp.le.s32.totalorder 1, %s12
      %p131 = scmp.lt.s32.totalorder %s12, 3
      %p132 = pnand %p130, %p131
      %p133 = pneg %p132
      // Predicated region
      $region9: #{tpu_custom_call.1} parent=5 // pred_check
        _
      $region10: #{tpu_custom_call.1} parent=5 // pred_check_branch
        %135 = sbr.rel (%p132) target = $region12
      $region11: #{tpu_custom_call.1} parent=5 // pred_region
        %s136 = ssub.s32 %s12, 1
        // Predicated region
        $region13: #{tpu_custom_call.1} parent=11 // pred_check
          %p137 = pneg %p73
        $region14: #{tpu_custom_call.1} parent=11 // pred_check_branch
          %139 = sbr.rel (%p137) target = $region16
        $region15: #{tpu_custom_call.1} parent=11 // pred_region
          _
        $region16: #{tpu_custom_call.1} parent=11 // pred_fallthru
          _
        // Predicated region
        $region17: #{tpu_custom_call.1} parent=11 // pred_check
          %p140 = pneg %p94
        $region18: #{tpu_custom_call.1} parent=11 // pred_check_branch
          %142 = sbr.rel (%p140) target = $region20
        $region19: #{tpu_custom_call.1} parent=11 // pred_region
          _
        $region20: #{tpu_custom_call.1} parent=11 // pred_fallthru
          _
      $region12: #{tpu_custom_call.1} parent=5 // pred_fallthru
        _
      %p143 = scmp.lt.s32.totalorder %s12, 2
      // Predicated region
      $region21: #{tpu_custom_call.1} parent=5 // pred_check
        %p144 = pneg %p143
      $region22: #{tpu_custom_call.1} parent=5 // pred_check_branch
        %146 = sbr.rel (%p144) target = $region24
      $region23: #{tpu_custom_call.1} parent=5 // pred_region
        // Predicated region
        $region25: #{tpu_custom_call.1} parent=23 // pred_check
          %p147 = pneg %p46
        $region26: #{tpu_custom_call.1} parent=23 // pred_check_branch
          %149 = sbr.rel (%p147) target = $region28
        $region27: #{tpu_custom_call.1} parent=23 // pred_region
          %s150 = sand.u32 %s36, 1
          %s151 = scalar_lea.sflag [#allocation3], %s150
          %s152 = sand.u32 %s36, 1
          %s153 = smul.addr %s152, 192
          %s154 = scalar_lea.vmem [#allocation2], %s153
          %s155 = smul.u32 2, %s20
          %s157 = ssub.s32 3072, 3072
          %158 = vsyncadd %s151, %s157
          %s159 = smul.addr %s19, 24
          %s160 = sadd.s32 %s155, %s159
          %s161 = smul.addr %s160, 128
          %s162 = scalar_lea.hbm %s0, %s161
          %s163 = sshll.u32 %s154, 4
          %s164 = int_to_ptr.vmem [resolvable:$true] %s163
          %169 = dma.hbm_to_vmem [thread:$0]  %s162, 3072, %s164, %s151, 256, 256, 16
        $region28: #{tpu_custom_call.1} parent=23 // pred_fallthru
          _
      $region24: #{tpu_custom_call.1} parent=5 // pred_fallthru
        _
      %p170 = scmp.le.s32.totalorder 1, %s12
      %p171 = scmp.lt.s32.totalorder %s12, 3
      %p172 = pnand %p170, %p171
      %p173 = pneg %p172
      // Predicated region
      $region29: #{tpu_custom_call.1} parent=5 // pred_check
        _
      $region30: #{tpu_custom_call.1} parent=5 // pred_check_branch
        %175 = sbr.rel (%p172) target = $region32
      $region31: #{tpu_custom_call.1} parent=5 // pred_region
        %s176 = ssub.s32 %s12, 1
        %s177 = sand.u32 %s39, 1
        %s178 = scalar_lea.sflag [#allocation3], %s177
        %s179 = sand.u32 %s39, 1
        %s180 = smul.addr %s179, 192
        %s181 = scalar_lea.vmem [#allocation2], %s180
        // Predicated region
        $region33: #{tpu_custom_call.1} parent=31 // pred_check
          %p182 = pneg %p52
        $region34: #{tpu_custom_call.1} parent=31 // pred_check_branch
          %184 = sbr.rel (%p182) target = $region36
        $region35: #{tpu_custom_call.1} parent=31 // pred_region
          %185 = dma.done %s178, 3072
        $region36: #{tpu_custom_call.1} parent=31 // pred_fallthru
          _
        %s186 = sand.u32 %s39, 1
        %s187 = scalar_lea.sflag [#allocation3], %s186
        %s188 = sand.u32 %s39, 1
        %s189 = smul.addr %s188, 192
        %s190 = scalar_lea.vmem [#allocation2], %s189
        %p191 = pneg %p52
        %p192 = pneg %p49
        %p193 = pneg %p73
        %p194 = pneg %p70
        %p195 = pneg %p94
        %p196 = pneg %p91
        %p197 = pneg %p122
        %p198 = pneg %p119
        %s199 = smul.u32 32, %s22
        %p200 = scmp.lt.s32.totalorder %s21, 1
        %s201 = scalar_select %p200, %s21, 1
        %p202 = scmp.lt.s32.totalorder %s199, 31
        %s203 = scalar_select %p202, %s199, 31
        %s204 = smul.addr %s201, 32
        %s205 = sadd.s32 %s203, %s204
        %s206 = smul.addr %s205, 8
        %s207 = scalar_lea.vmem %s3, %s206
        %s208 = smul.u32 2, %s22
        %s209 = smul.u32 32, %s22
        %p210 = scmp.lt.s32.totalorder %s21, 1
        %s211 = scalar_select %p210, %s21, 1
        %p212 = scmp.lt.s32.totalorder %s209, 31
        %s213 = scalar_select %p212, %s209, 31
        %s214 = smul.addr %s211, 32
        %s215 = sadd.s32 %s213, %s214
        %s216 = smul.addr %s215, 8
        %s217 = scalar_lea.vmem %s3, %s216
        %s218 = smul.u32 32, %s22
        %v219 = vld [vmem:[%s181] sm:$0xff]
        %v220 = vld [vmem:[%s181 + $0x8] sm:$0xff]
        %v221 = vld [vmem:[%s181 + $0x10] sm:$0xff]
        %v222 = vld [vmem:[%s181 + $0x18] sm:$0xff]
        %v223 = vld [vmem:[%s181 + $0x20] sm:$0xff]
        %v224 = vld [vmem:[%s181 + $0x28] sm:$0xff]
        %v225 = vld [vmem:[%s181 + $0x30] sm:$0xff]
        %v226 = vld [vmem:[%s181 + $0x38] sm:$0xff]
        %v227 = vld [vmem:[%s181 + $0x40] sm:$0xff]
        %v228 = vld [vmem:[%s181 + $0x48] sm:$0xff]
        %v229 = vld [vmem:[%s181 + $0x50] sm:$0xff]
        %v230 = vld [vmem:[%s181 + $0x58] sm:$0xff]
        %v231 = vld [vmem:[%s181 + $0x60] sm:$0xff]
        %v232 = vld [vmem:[%s181 + $0x68] sm:$0xff]
        %v233 = vld [vmem:[%s181 + $0x70] sm:$0xff]
        %v234 = vld [vmem:[%s181 + $0x78] sm:$0xff]
        %v235 = vld [vmem:[%s181 + $0x80] sm:$0xff]
        %v236 = vld [vmem:[%s181 + $0x88] sm:$0xff]
        %v237 = vld [vmem:[%s181 + $0x90] sm:$0xff]
        %v238 = vld [vmem:[%s181 + $0x98] sm:$0xff]
        %v239 = vld [vmem:[%s181 + $0xa0] sm:$0xff]
        %v240 = vld [vmem:[%s181 + $0xa8] sm:$0xff]
        %v241 = vld [vmem:[%s181 + $0xb0] sm:$0xff]
        %v242 = vld [vmem:[%s181 + $0xb8] sm:$0xff]
        %243 = vxpose.xlu0.b32.start [1/16] %v219, 128
        %244 = vxpose.xlu0.b32.cont [2/16] %v221, 128
        %245 = vxpose.xlu0.b32.cont [3/16] %v223, 128
        %246 = vxpose.xlu0.b32.cont [4/16] %v225, 128
        %247 = vxpose.xlu0.b32.cont [5/16] %v227, 128
        %248 = vxpose.xlu0.b32.cont [6/16] %v229, 128
        %249 = vxpose.xlu0.b32.cont [7/16] %v231, 128
        %250 = vxpose.xlu0.b32.cont [8/16] %v233, 128
        %251 = vxpose.xlu0.b32.cont [9/16] %v235, 128
        %252 = vxpose.xlu0.b32.cont [10/16] %v237, 128
        %253 = vxpose.xlu0.b32.cont [11/16] %v239, 128
        %254 = vxpose.xlu0.b32.cont [12/16] %v241, 128
        %255 = vxpose.xlu0.b32.cont [13/16] 0.0, 128
        %256 = vxpose.xlu0.b32.cont [14/16] 0.0, 128
        %257 = vxpose.xlu0.b32.cont [15/16] 0.0, 128
        %258 = vxpose.xlu0.b32.end [16/16] 0.0, 128
        %v259 = vpop.trf.xlu0
        %v260 = vpop.trf.xlu0
        %v261 = vpop.trf.xlu0
        %v262 = vpop.trf.xlu0
        %v263 = vpop.trf.xlu0
        %v264 = vpop.trf.xlu0
        %v265 = vpop.trf.xlu0
        %v266 = vpop.trf.xlu0
        %v267 = vpop.trf.xlu0
        %v268 = vpop.trf.xlu0
        %v269 = vpop.trf.xlu0
        %v270 = vpop.trf.xlu0
        %v271 = vpop.trf.xlu0
        %v272 = vpop.trf.xlu0
        %v273 = vpop.trf.xlu0
        %v274 = vpop.trf.xlu0
        %275 = vxpose.xlu0.b32.start [1/16] %v220, 128
        %276 = vxpose.xlu0.b32.cont [2/16] %v222, 128
        %277 = vxpose.xlu0.b32.cont [3/16] %v224, 128
        %278 = vxpose.xlu0.b32.cont [4/16] %v226, 128
        %279 = vxpose.xlu0.b32.cont [5/16] %v228, 128
        %280 = vxpose.xlu0.b32.cont [6/16] %v230, 128
        %281 = vxpose.xlu0.b32.cont [7/16] %v232, 128
        %282 = vxpose.xlu0.b32.cont [8/16] %v234, 128
        %283 = vxpose.xlu0.b32.cont [9/16] %v236, 128
        %284 = vxpose.xlu0.b32.cont [10/16] %v238, 128
        %285 = vxpose.xlu0.b32.cont [11/16] %v240, 128
        %286 = vxpose.xlu0.b32.cont [12/16] %v242, 128
        %287 = vxpose.xlu0.b32.cont [13/16] 0.0, 128
        %288 = vxpose.xlu0.b32.cont [14/16] 0.0, 128
        %289 = vxpose.xlu0.b32.cont [15/16] 0.0, 128
        %290 = vxpose.xlu0.b32.end [16/16] 0.0, 128
        %v291 = vpop.trf.xlu0
        %v292 = vpop.trf.xlu0
        %v293 = vpop.trf.xlu0
        %v294 = vpop.trf.xlu0
        %v295 = vpop.trf.xlu0
        %v296 = vpop.trf.xlu0
        %v297 = vpop.trf.xlu0
        %v298 = vpop.trf.xlu0
        %v299 = vpop.trf.xlu0
        %v300 = vpop.trf.xlu0
        %v301 = vpop.trf.xlu0
        %v302 = vpop.trf.xlu0
        %v303 = vpop.trf.xlu0
        %v304 = vpop.trf.xlu0
        %v305 = vpop.trf.xlu0
        %v306 = vpop.trf.xlu0
        %vm307 = vcmask 785408
        %308 = vst.msk [vmem:[%s217] sm:$0xff] %vm307, %v259
        %309 = vst.msk [vmem:[%s217 + $0x8] sm:$0xff] %vm307, %v260
        %310 = vst.msk [vmem:[%s217 + $0x10] sm:$0xff] %vm307, %v261
        %311 = vst.msk [vmem:[%s217 + $0x18] sm:$0xff] %vm307, %v262
        %312 = vst.msk [vmem:[%s217 + $0x20] sm:$0xff] %vm307, %v263
        %313 = vst.msk [vmem:[%s217 + $0x28] sm:$0xff] %vm307, %v264
        %314 = vst.msk [vmem:[%s217 + $0x30] sm:$0xff] %vm307, %v265
        %315 = vst.msk [vmem:[%s217 + $0x38] sm:$0xff] %vm307, %v266
        %316 = vst.msk [vmem:[%s217 + $0x40] sm:$0xff] %vm307, %v267
        %317 = vst.msk [vmem:[%s217 + $0x48] sm:$0xff] %vm307, %v268
        %318 = vst.msk [vmem:[%s217 + $0x50] sm:$0xff] %vm307, %v269
        %319 = vst.msk [vmem:[%s217 + $0x58] sm:$0xff] %vm307, %v270
        %320 = vst.msk [vmem:[%s217 + $0x60] sm:$0xff] %vm307, %v271
        %321 = vst.msk [vmem:[%s217 + $0x68] sm:$0xff] %vm307, %v272
        %322 = vst.msk [vmem:[%s217 + $0x70] sm:$0xff] %vm307, %v273
        %323 = vst.msk [vmem:[%s217 + $0x78] sm:$0xff] %vm307, %v274
        %324 = vst.msk [vmem:[%s217 + $0x80] sm:$0xff] %vm307, %v291
        %325 = vst.msk [vmem:[%s217 + $0x88] sm:$0xff] %vm307, %v292
        %326 = vst.msk [vmem:[%s217 + $0x90] sm:$0xff] %vm307, %v293
        %327 = vst.msk [vmem:[%s217 + $0x98] sm:$0xff] %vm307, %v294
        %328 = vst.msk [vmem:[%s217 + $0xa0] sm:$0xff] %vm307, %v295
        %329 = vst.msk [vmem:[%s217 + $0xa8] sm:$0xff] %vm307, %v296
        %330 = vst.msk [vmem:[%s217 + $0xb0] sm:$0xff] %vm307, %v297
        %331 = vst.msk [vmem:[%s217 + $0xb8] sm:$0xff] %vm307, %v298
        %332 = vst.msk [vmem:[%s217 + $0xc0] sm:$0xff] %vm307, %v299
        %333 = vst.msk [vmem:[%s217 + $0xc8] sm:$0xff] %vm307, %v300
        %334 = vst.msk [vmem:[%s217 + $0xd0] sm:$0xff] %vm307, %v301
        %335 = vst.msk [vmem:[%s217 + $0xd8] sm:$0xff] %vm307, %v302
        %336 = vst.msk [vmem:[%s217 + $0xe0] sm:$0xff] %vm307, %v303
        %337 = vst.msk [vmem:[%s217 + $0xe8] sm:$0xff] %vm307, %v304
        %338 = vst.msk [vmem:[%s217 + $0xf0] sm:$0xff] %vm307, %v305
        %339 = vst.msk [vmem:[%s217 + $0xf8] sm:$0xff] %vm307, %v306
        %s340 = smul.u32 32, %s22
        %p341 = scmp.lt.s32.totalorder %s21, 1
        %s342 = scalar_select %p341, %s21, 1
        %p343 = scmp.lt.s32.totalorder %s340, 31
        %s344 = scalar_select %p343, %s340, 31
        %s345 = smul.addr %s342, 32
        %s346 = sadd.s32 %s344, %s345
        %s347 = smul.addr %s346, 8
        %s348 = scalar_lea.vmem %s3, %s347
        // Predicated region
        $region37: #{tpu_custom_call.1} parent=31 // pred_check
          %p349 = pneg %p119
        $region38: #{tpu_custom_call.1} parent=31 // pred_check_branch
          %351 = sbr.rel (%p349) target = $region40
        $region39: #{tpu_custom_call.1} parent=31 // pred_region
          %s352 = smul.u32 32, %s22
        $region40: #{tpu_custom_call.1} parent=31 // pred_fallthru
          _
      $region32: #{tpu_custom_call.1} parent=5 // pred_fallthru
        _
      %p353 = scmp.le.s32.totalorder 2, %s12
      // Predicated region
      $region41: #{tpu_custom_call.1} parent=5 // pred_check
        %p354 = pneg %p353
      $region42: #{tpu_custom_call.1} parent=5 // pred_check_branch
        %356 = sbr.rel (%p354) target = $region44
      $region43: #{tpu_custom_call.1} parent=5 // pred_region
        %s357 = ssub.s32 %s12, 2
        // Predicated region
        $region45: #{tpu_custom_call.1} parent=43 // pred_check
          %p358 = pneg %p125
        $region46: #{tpu_custom_call.1} parent=43 // pred_check_branch
          %360 = sbr.rel (%p358) target = $region48
        $region47: #{tpu_custom_call.1} parent=43 // pred_region
          %s361 = smul.u32 32, %s24
          %p362 = scmp.lt.s32.totalorder %s23, 1
          %s363 = scalar_select %p362, %s23, 1
          %p364 = scmp.lt.s32.totalorder %s361, 31
          %s365 = scalar_select %p364, %s361, 31
          %s366 = smul.addr %s363, 32
          %s367 = sadd.s32 %s365, %s366
          %s368 = smul.addr %s367, 8
          %s369 = scalar_lea.vmem %s3, %s368
        $region48: #{tpu_custom_call.1} parent=43 // pred_fallthru
          _
      $region44: #{tpu_custom_call.1} parent=5 // pred_fallthru
        _
    $region6: #{tpu_custom_call.1} parent=1 // loop_footer
      %s16 = sadd.s32 1, %s12
    $region7: #{tpu_custom_call.1} parent=1 // loop_footer_branch
      %11 = sbr.rel target = $region3
    $region8: #{tpu_custom_call.1} parent=1 // loop_exit
      _
    %370 = vsyncpa [#allocation3], 1
    %s371 = scalar_lea.sflag [#allocation3], 1
    %372 = vsyncpa %s371, 1

</llo_original>
